<compile_context>
chip_gen: v6e
topology: v6e:2x2x1
jax: 0.10.0
libtpu: 0.0.40
codegen_flags: <defaults>
</compile_context>

<pallas_src>
import itertools
import math

import numpy as np
import jax
import jax.numpy as jnp
from jax.experimental import pallas as pl
from jax.experimental.pallas import tpu as pltpu


def make_list(x, n):
    if isinstance(x, (list, tuple)):
        assert len(x) == n
        return list(x)
    return [x] * n


def _round_up(x, m):
    return (x + m - 1) // m * m


# ---------------------------------------------------------------------------
# Generation-aware VMEM budget
# ---------------------------------------------------------------------------
def _tpu_vmem_budget():
    """Return (tile budget bytes, vmem_limit_bytes or None)."""
    try:
        info = pltpu.get_tpu_info()
        cap = int(info.vmem_capacity_bytes)
        if cap <= 0:
            raise ValueError("bad vmem capacity")
        # ~55% of per-core VMEM for our (double-buffered) blocks, leave the
        # rest for compiler scratch.  v6e/v5e (128 MiB) -> ~70 MiB,
        # v7x (64 MiB / TC) -> ~35 MiB.
        budget = min(int(0.55 * cap), 96 * 1024 * 1024)
        limit = min(int(0.85 * cap), cap - 2 * 1024 * 1024)
        limit = min(max(limit, budget + 4 * 1024 * 1024), cap)
        return budget, limit
    except Exception:
        # Unknown chip: stay under every generation's default scoped limit.
        return 12 * 1024 * 1024, None


# ---------------------------------------------------------------------------
# Pallas kernels
# ---------------------------------------------------------------------------
def _single_k_kernel(a_ref, b_ref, bias_ref, o_ref):
    # One K step: no accumulator scratch, no RMW pass; bias folded into store.
    acc = jnp.dot(a_ref[...], b_ref[...], preferred_element_type=jnp.float32)
    o_ref[...] = (acc + bias_ref[...].astype(jnp.float32)).astype(o_ref.dtype)


def _multi_k_kernel(a_ref, b_ref, bias_ref, o_ref, acc_ref):
    k = pl.program_id(1)

    @pl.when(k == 0)
    def _():
        # Fold the bias add into the accumulator init.
        acc_ref[...] = jnp.broadcast_to(
            bias_ref[...].astype(jnp.float32), acc_ref.shape)

    acc_ref[...] += jnp.dot(a_ref[...], b_ref[...],
                            preferred_element_type=jnp.float32)

    @pl.when(k == pl.num_programs(1) - 1)
    def _():
        o_ref[...] = acc_ref[...].astype(o_ref.dtype)


def _single_k_matmul(a, b, bias, *, tn, tcout, out_dtype, vmem_limit):
    """a: (Npad, Kdim) bf16, b: (Kdim, CoutPad) bf16, bias: (1, CoutPad) f32."""
    npad, kdim = a.shape
    cout_pad = b.shape[1]
    grid = (npad // tn, cout_pad // tcout)
    cp = dict(dimension_semantics=("parallel", "parallel"))
    if vmem_limit is not None:
        cp["vmem_limit_bytes"] = int(vmem_limit)
    return pl.pallas_call(
        _single_k_kernel,
        out_shape=jax.ShapeDtypeStruct((npad, cout_pad), out_dtype),
        grid_spec=pltpu.PrefetchScalarGridSpec(
            num_scalar_prefetch=0,
            grid=grid,
            in_specs=[
                # A block re-used across the (inner) Cout axis: block index
                # unchanged -> no redundant DMA.
                pl.BlockSpec((tn, kdim), lambda i, c: (i, 0)),
                # Full-K weight block per Cout tile -> VMEM-resident, fetched
                # once per Cout tile (not once per N tile).
                pl.BlockSpec((kdim, tcout), lambda i, c: (0, c)),
                pl.BlockSpec((1, tcout), lambda i, c: (0, c)),
            ],
            out_specs=pl.BlockSpec((tn, tcout), lambda i, c: (i, c)),
        ),
        compiler_params=pltpu.CompilerParams(**cp),
    )(a, b, bias)


def _multi_k_matmul(a, b, bias, *, tn, tk, out_dtype, vmem_limit):
    """Fallback for very large kdim: K-reduction over the last grid axis."""
    npad, kpad = a.shape
    cout_pad = b.shape[1]
    grid = (npad // tn, kpad // tk)
    cp = dict(dimension_semantics=("parallel", "arbitrary"))
    if vmem_limit is not None:
        cp["vmem_limit_bytes"] = int(vmem_limit)
    return pl.pallas_call(
        _multi_k_kernel,
        out_shape=jax.ShapeDtypeStruct((npad, cout_pad), out_dtype),
        grid_spec=pltpu.PrefetchScalarGridSpec(
            num_scalar_prefetch=0,
            grid=grid,
            in_specs=[
                pl.BlockSpec((tn, tk), lambda i, k: (i, k)),
                # TODO(synk): when B fits VMEM, keep it resident (constant
                # index map + in-kernel pl.ds slice) instead of streaming per k.
                pl.BlockSpec((tk, cout_pad), lambda i, k: (k, 0)),
                pl.BlockSpec((1, cout_pad), lambda i, k: (0, 0)),
            ],
            out_specs=pl.BlockSpec((tn, cout_pad), lambda i, k: (i, 0)),
            scratch_shapes=[pltpu.VMEM((tn, cout_pad), jnp.float32)],
        ),
        compiler_params=pltpu.CompilerParams(**cp),
    )(a, b, bias)


# ---------------------------------------------------------------------------
# Tile planning (generation-aware, bf16 inputs / f32 outputs)
# ---------------------------------------------------------------------------
def _plan(n, kdim, cout_pad, budget):
    """kdim must be 128-aligned. Returns a launch plan dict."""
    n8 = _round_up(max(n, 1), 8)

    # N tile: as large as possible, but guarantee >= 2 N tiles when N allows
    # so both v7x TensorCores (parallel axis) get work.
    tn_cap = min(2048, n8)
    if n8 >= 16:
        tn_cap = min(tn_cap, _round_up((n8 + 1) // 2, 8))

    def fits_single(tn_, tc_):
        vmem = (2 * tn_ * kdim * 2        # A bf16, double-buffered
                + 2 * kdim * tc_ * 2      # B bf16 (resident; 2 bufs allocated)
                + 2 * tn_ * tc_ * 4       # out f32, double-buffered
                + 2 * tc_ * 4)            # bias
        return vmem <= budget

    # Cout tiles: prefer full residency, else 256-multiples (v6e/v7x MXU is
    # 2x256x256), 128 as last resort.
    cout_tiles = [cout_pad]
    for t in (1024, 512, 256, 128):
        if t < cout_pad and cout_pad % t == 0:
            cout_tiles.append(t)

    for tc in cout_tiles:
        tn = tn_cap
        while tn > 256 and not fits_single(tn, tc):
            tn = max(256, (tn // 2) // 8 * 8)
        if fits_single(tn, tc):
            return dict(mode="single", tn=tn, tcout=tc)

    tc = cout_tiles[-1]
    tn = min(256, tn_cap)
    while tn > 8 and not fits_single(tn, tc):
        tn = max(8, (tn // 2) // 8 * 8)
    if fits_single(tn, tc):
        return dict(mode="single", tn=tn, tcout=tc)

    # Fallback: stream B over a K reduction axis (only for huge kdim).
    q = kdim // 128

    def tk_for(cap_units):
        best = 1
        for d in range(1, q + 1):
            if q % d == 0 and d <= cap_units:
                best = d
        return best * 128

    tn = min(512, n8)
    tk = tk_for(8)

    def vmem_multi(tn_, tk_):
        return (2 * tn_ * tk_ * 2 + 2 * tk_ * cout_pad * 2
                + 2 * tn_ * cout_pad * 4 + tn_ * cout_pad * 4
                + 2 * cout_pad * 4)

    while vmem_multi(tn, tk) > budget and (tn > 8 or tk > 128):
        if tk > 128:
            tk = tk_for(max(1, (tk // 128) // 2))
        elif tn > 8:
            tn = max(8, (tn // 2) // 8 * 8)
        else:
            break
    return dict(mode="multi", tn=tn, tk=tk)


# ---------------------------------------------------------------------------
# Host-side glue: kernel-map (neighbor indices) from coordinates (vectorized)
# ---------------------------------------------------------------------------
def _kernel_offsets(kernel_size):
    ranges = []
    for ks in kernel_size:
        if ks % 2 == 1:
            ranges.append(range(-(ks // 2), ks // 2 + 1))
        else:
            # TODO(synk): verify even-kernel offset convention vs torchsparse.
            ranges.append(range(0, ks))
    return np.array(list(itertools.product(*ranges)), dtype=np.int64)


def build_kernel_map(coords, kernel_size, dilation):
    """coords: (N, 5) int, last column is the batch index.

    Returns nbr (KVOL, N) int32 with -1 for missing neighbors, and a bool
    validity mask of the same shape. Sort/searchsorted lookup (no dict loop).
    """
    coords = np.asarray(coords, dtype=np.int64)
    n = coords.shape[0]
    offsets = _kernel_offsets(kernel_size) * np.asarray(dilation, np.int64)
    kvol = offsets.shape[0]

    queries = coords[None, :, :4] + offsets[:, None, :]          # (KVOL, N, 4)
    qb = np.broadcast_to(coords[None, :, 4], (kvol, n))[..., None]
    q5 = np.concatenate([queries, qb], axis=-1)                  # (KVOL, N, 5)

    all_pts = np.concatenate([coords[None], q5], axis=0).reshape(-1, 5)
    lo = all_pts.min(axis=0)
    ext = all_pts.max(axis=0) - lo + 1

    def encode(c):
        key = np.zeros(c.shape[:-1], dtype=np.int64)
        for d in range(5):
            key = key * ext[d] + (c[..., d] - lo[d])
        return key

    table_keys = encode(coords)                                  # (N,)
    query_keys = encode(q5)                                      # (KVOL, N)
    order = np.argsort(table_keys, kind="stable")
    sorted_keys = table_keys[order]
    pos = np.clip(np.searchsorted(sorted_keys, query_keys), 0, n - 1)
    found = sorted_keys[pos] == query_keys
    nbr = np.where(found, order[pos], -1).astype(np.int32)
    return nbr, found


# ---------------------------------------------------------------------------
# Forward
# ---------------------------------------------------------------------------
def conv4d(feats, coords, kernel, bias, kernel_size, stride, dilation,
           transpose):
    n, cin = feats.shape
    out_dtype = feats.dtype
    budget, vmem_limit = _tpu_vmem_budget()
    # bf16 operands, f32 accumulation: matches default MXU precision while
    # halving HBM/VMEM bytes of the dominant im2col A stream.
    feats_bf = feats.astype(jnp.bfloat16)

    if kernel.ndim == 2:                              # kernel_size == 1 path
        cout = kernel.shape[1]
        cout_pad = _round_up(cout, 128)
        kdim_pad = _round_up(cin, 128)                # lane alignment (A = feats, tiny)
        plan = _plan(n, kdim_pad, cout_pad, budget)
        tn = plan["tn"]
        npad = _round_up(max(n, 1), tn)
        a = jnp.pad(feats_bf, ((0, npad - n), (0, kdim_pad - cin)))
        b = jnp.pad(kernel.astype(jnp.bfloat16),
                    ((0, kdim_pad - cin), (0, cout_pad - cout)))
    else:
        # TODO(synk): stride > 1 and transposed conv change the output
        # coordinate set (torchsparse down/up-samples coords); only the
        # stride=1, non-transposed path is implemented here.
        assert not transpose and all(int(s) == 1 for s in stride)
        kvol = kernel.shape[0]
        cout = kernel.shape[2]
        kdim = kvol * cin
        cout_pad = _round_up(cout, 128)

        # Align K = kvol*cin to 128 lanes.  When Cin divides 128 (the common
        # power-of-two case) the padding is folded into the tiny idx array:
        # extra kernel-offset columns simply gather the appended zero row, so
        # no separate pad pass over the KVOL-expanded A.
        if cin % 128 == 0 or 128 % cin == 0:
            kvol_pad = kvol if cin % 128 == 0 else _round_up(kvol, 128 // cin)
            kdim_pad = kvol_pad * cin
            pad_a_cols = 0
        else:
            # TODO(synk): fold the K padding into the gather for non-power-of-2
            # Cin as well (currently one extra pad pass over A in that case).
            kvol_pad = kvol
            kdim_pad = _round_up(kdim, 128)
            pad_a_cols = kdim_pad - kdim

        plan = _plan(n, kdim_pad, cout_pad, budget)
        tn = plan["tn"]
        npad = _round_up(max(n, 1), tn)

        nbr, valid = build_kernel_map(np.asarray(coords), kernel_size, dilation)
        # Missing neighbors and all pad rows/columns point at the appended
        # zero feature row (index n): no jnp.where select, no jnp.pad over A.
        idx = np.full((npad, kvol_pad), n, dtype=np.int32)
        idx[:n, :kvol] = np.where(valid, nbr, n).astype(np.int32).T

        feats_ext = jnp.concatenate(
            [feats_bf, jnp.zeros((1, cin), jnp.bfloat16)], axis=0)
        # im2col gather directly into the padded (npad, kdim_pad) bf16 layout.
        # TODO(synk): the gather could be moved inside the Pallas kernel via
        # scalar-prefetched neighbor indices + manual DMA to cut HBM traffic
        # further (removes the materialized A entirely).
        a = feats_ext[jnp.asarray(idx)].reshape(npad, kvol_pad * cin)
        if pad_a_cols:
            a = jnp.pad(a, ((0, 0), (0, pad_a_cols)))

        b = kernel.reshape(kdim, cout).astype(jnp.bfloat16)
        b = jnp.pad(b, ((0, kdim_pad - kdim), (0, cout_pad - cout)))

    if bias is not None:
        bias_row = bias.reshape(1, cout).astype(jnp.float32)
    else:
        bias_row = jnp.zeros((1, cout), jnp.float32)
    bias_p = jnp.pad(bias_row, ((0, 0), (0, cout_pad - cout)))

    if plan["mode"] == "single":
        out = _single_k_matmul(a, b, bias_p, tn=plan["tn"], tcout=plan["tcout"],
                               out_dtype=out_dtype, vmem_limit=vmem_limit)
    else:
        out = _multi_k_matmul(a, b, bias_p, tn=plan["tn"], tk=plan["tk"],
                              out_dtype=out_dtype, vmem_limit=vmem_limit)
    return out[:n, :cout]


# ---------------------------------------------------------------------------
# Module (deterministic parameter init mirroring the PyTorch code)
# ---------------------------------------------------------------------------
class Conv4d:
    def __init__(self, in_channels, out_channels, kernel_size=3, stride=1,
                 dilation=1, bias=False, transpose=False, *, key):
        self.in_channels = in_channels
        self.out_channels = out_channels
        self.kernel_size = make_list(kernel_size, 4)
        self.stride = make_list(stride, 4)
        self.dilation = make_list(dilation, 4)
        self.t = transpose
        kvol = int(np.prod(self.kernel_size))
        kw, kb = jax.random.split(key)
        if kvol > 1:
            kshape = (kvol, in_channels, out_channels)
        else:
            assert not transpose
            kshape = (in_channels, out_channels)
        # Matches PyTorch exactly: std uses kernel.shape[0] (== kvol when
        # kvol > 1, == in_channels for the 2-D kernel case).
        std = 1.0 / math.sqrt(out_channels if self.t
                              else in_channels * kshape[0])
        self.kernel = jax.random.uniform(kw, kshape, jnp.float32, -std, std)
        self.bias = (jax.random.uniform(kb, (out_channels,), jnp.float32,
                                        -std, std) if bias else None)
        if kvol == 1:
            assert not transpose

    def __call__(self, feats, coords):
        return conv4d(feats, coords, self.kernel, self.bias,
                      kernel_size=self.kernel_size, stride=self.stride,
                      dilation=self.dilation, transpose=self.t)


# ---------------------------------------------------------------------------
# Demo / self-check
# ---------------------------------------------------------------------------
if __name__ == "__main__":
    key = jax.random.PRNGKey(0)
    k_coords, k_feats, k_param = jax.random.split(key, 3)

    N_RAW, CIN, COUT = 96, 8, 16
    GRID = 6   # small 4-D spatial extent, 2 batches

    raw = np.asarray(jax.random.randint(k_coords, (N_RAW, 5), 0, GRID)).copy()
    raw[:, 4] = raw[:, 4] % 2                         # batch index in {0, 1}
    coords = np.unique(raw, axis=0).astype(np.int32)  # unique active 4-D sites
    N = coords.shape[0]

    feats = jax.random.normal(k_feats, (N, CIN), jnp.float32)

    conv = Conv4d(CIN, COUT, kernel_size=3, stride=1, dilation=1,
                  bias=True, key=k_param)

    out = conv(feats, jnp.asarray(coords))
    out = jax.block_until_ready(out)
    assert out.shape == (N, COUT)

    # Pure-JAX reference with the same intended numerics (bf16 operands,
    # f32 accumulation): gather via zero-row remap + einsum reduction.
    nbr, valid = build_kernel_map(coords, conv.kernel_size, conv.dilation)
    idx_ref = jnp.asarray(np.where(valid, nbr, N).astype(np.int32))   # (KVOL, N)
    feats_ext = jnp.concatenate(
        [feats.astype(jnp.bfloat16), jnp.zeros((1, CIN), jnp.bfloat16)], axis=0)
    gathered = feats_ext[idx_ref]                                     # (KVOL, N, CIN)
    ref = jnp.einsum('kni,kio->no', gathered,
                     conv.kernel.astype(jnp.bfloat16),
                     preferred_element_type=jnp.float32) + conv.bias[None, :]
    err = float(jnp.max(jnp.abs(out - ref)))
    assert jnp.allclose(out, ref, atol=2e-2, rtol=2e-2), err

    print("KERNEL_OK")
</pallas_src>

<mosaic_0001>
module attributes {stable_mosaic.version = 11 : i64} {
  func.func @_single_k_kernel(%arg0: i32, %arg1: i32, %arg2: memref<48x768xbf16, #tpu.memory_space<vmem>>, %arg3: memref<768x128xbf16, #tpu.memory_space<vmem>>, %arg4: memref<1x128xf32, #tpu.memory_space<vmem>>, %arg5: memref<48x128xf32, #tpu.memory_space<vmem>>) attributes {dimension_semantics = [#tpu.dimension_semantics<parallel>, #tpu.dimension_semantics<parallel>], iteration_bounds = array<i64: 2, 1>, scalar_prefetch = 0 : i64, scratch_operands = 0 : i64, tpu.core_type = #tpu.core_type<tc>, window_params = [{transform_indices = @transform_0, window_bounds = array<i64: 48, 768>}, {transform_indices = @transform_1, window_bounds = array<i64: 768, 128>}, {transform_indices = @transform_2, window_bounds = array<i64: 1, 128>}, {transform_indices = @transform_3, window_bounds = array<i64: 48, 128>}]} {
    %c0 = arith.constant 0 : index
    %c0_0 = arith.constant 0 : index
    %0 = vector.load %arg2[%c0, %c0_0] : memref<48x768xbf16, #tpu.memory_space<vmem>>, vector<48x768xbf16>
    %c0_1 = arith.constant 0 : index
    %c0_2 = arith.constant 0 : index
    %1 = vector.load %arg3[%c0_1, %c0_2] : memref<768x128xbf16, #tpu.memory_space<vmem>>, vector<768x128xbf16>
    %cst = arith.constant dense<0.000000e+00> : vector<48x128xf32>
    %2 = tpu.matmul %0, %1, %cst {dimension_numbers = #tpu.dot_dimension_numbers<[1], [0], [0], [1], [0, 0, 1, 1], [], []>} : vector<48x768xbf16>, vector<768x128xbf16>, vector<48x128xf32> -> vector<48x128xf32>
    %c0_3 = arith.constant 0 : index
    %c0_4 = arith.constant 0 : index
    %3 = vector.load %arg4[%c0_3, %c0_4] : memref<1x128xf32, #tpu.memory_space<vmem>>, vector<1x128xf32>
    %4 = vector.broadcast %3 : vector<1x128xf32> to vector<48x128xf32>
    %5 = arith.addf %2, %4 : vector<48x128xf32>
    %c0_5 = arith.constant 0 : index
    %c0_6 = arith.constant 0 : index
    %6 = vector.load %arg5[%c0_5, %c0_6] : memref<48x128xf32, #tpu.memory_space<vmem>>, vector<48x128xf32>
    tpu.vector_store %arg5[%c0_5, %c0_6], %5 {strides = array<i32>} : memref<48x128xf32, #tpu.memory_space<vmem>>, vector<48x128xf32>,
    return
  }
  func.func @transform_0(%arg0: i32, %arg1: i32) -> (i32, i32) {
    %c0_i32 = arith.constant 0 : i32
    %c0_i32_0 = arith.constant 0 : i32
    return %arg0, %c0_i32 : i32, i32
  }
  func.func @transform_1(%arg0: i32, %arg1: i32) -> (i32, i32) {
    %c0_i32 = arith.constant 0 : i32
    %c0_i32_0 = arith.constant 0 : i32
    return %c0_i32, %arg1 : i32, i32
  }
  func.func @transform_2(%arg0: i32, %arg1: i32) -> (i32, i32) {
    %c0_i32 = arith.constant 0 : i32
    %c0_i32_0 = arith.constant 0 : i32
    return %c0_i32, %arg1 : i32, i32
  }
  func.func @transform_3(%arg0: i32, %arg1: i32) -> (i32, i32) {
    %c0_i32 = arith.constant 0 : i32
    return %arg0, %arg1 : i32, i32
  }
}

</mosaic_0001>

<llo_original>
// kernel: tpu_custom_call.1
$region0: #{tpu_custom_call.1}
  #allocation0 [shape = 'u32[]', space=smem, size = 0x4, offset = 0x4, fixed_abs, tag = 'smem constant byte address 0x4 - core index']
  #allocation1 [shape = 'u32[144,128]{1,0:T(1,128)}', space=vmem, size = 0x12000, scoped, tag = 'internal scratch']
  %s0 = inlined_call_operand.hbm [shape: bf16[96,768], index: 0, kind: input, shape index: {}]
  %s1 = inlined_call_operand.hbm [shape: bf16[768,128], index: 1, kind: input, shape index: {}]
  %s2 = inlined_call_operand.vmem [shape: f32[1,128], index: 2, kind: input, shape index: {}]
  %s3 = inlined_call_operand.hbm [shape: f32[96,128], index: 3, kind: output, shape index: {}]
  %s4 = sld [smem:[#allocation0]]
  $region53: #{tpu_custom_call.1} parent=0
    _
  %s6 = ssub.s32 1, %s4
  %s7 = scalar_select 0, %s6, %s4
  $region1: #{tpu_custom_call.1} parent=0
    #allocation2 [shape = 'u8[147456]{0}', space=vmem, size = 0x24000, scoped, tag = 'input window, operand 0']
    #allocation3 [shape = 's32[2]{0}', space=sflag, size = 0x8, scoped, tag = 'scoped memory for tpu_custom_call.1']
    #allocation4 [shape = 's32[2]{0}', space=sflag, size = 0x8, scoped, tag = 'scoped memory for tpu_custom_call.1']
    #allocation5 [shape = 'u8[196608]{0}', space=vmem, size = 0x30000, scoped, tag = 'input window, operand 1, single buffered']
    #allocation6 [shape = 's32[1]{0}', space=sflag, size = 0x4, scoped, tag = 'scoped memory for tpu_custom_call.1']
    #allocation7 [shape = 'u8[49152]{0}', space=vmem, size = 0xc000, scoped, tag = 'output window, operand 0']
    %8 = vsyncpa [#allocation3], 0
    %s9 = scalar_lea.sflag [#allocation3], 1
    %10 = vsyncpa %s9, 0
    %11 = vsyncpa [#allocation6], 0
    %12 = vsyncpa [#allocation4], 0
    %s13 = scalar_lea.sflag [#allocation4], 1
    %14 = vsyncpa %s13, 0
    loop: start=0, step=1, limit=4
    $region2: #{tpu_custom_call.1} parent=1 // loop_pre_header
      _
    $region3: #{tpu_custom_call.1} parent=1 // loop_header
      %s16 = sphi 0, %s20
      %p17 = scmp.ge.s32.totalorder %s16, 4
      %s23 = sphi 0, %s35
      %s24 = sphi 0, %s31
      %s25 = sphi 0, %s23
      %s26 = sphi 0, %s24
      %s27 = sphi 0, %s25
      %s28 = sphi 0, %s26
      %s38 = sphi 0, %s40
      %s41 = sphi 0, %s38
      %s42 = sphi 0, %s41
      %s58 = sphi 0, %s42
      %s64 = sphi 0, %s66
      %s67 = sphi 0, %s64
      %s68 = sphi 0, %s67
      %s84 = sphi 0, %s68
      %s90 = sphi 0, %s92
      %s93 = sphi 0, %s90
      %s94 = sphi 0, %s93
      %s110 = sphi 0, %s94
      %s118 = sphi 0, %s120
      %s121 = sphi 0, %s118
      %s122 = sphi 0, %s121
      %s138 = sphi 0, %s122
    $region4: #{tpu_custom_call.1} parent=1 // loop_header_branch
      %19 = sbr.rel (%p17) target = $region8
    $region5: #{tpu_custom_call.1} parent=1 // loop_body
      %s21 = ssub.s32 %s16, 1
      %s22 = ssub.s32 %s16, 2
      %s29 = sadd.s32 1, %s24
      %p30 = scmp.ge.s32.totalorder %s29, 1
      %s31 = scalar_select %p30, 0, %s29
      %s32 = sadd.s32 1, %s23
      %s33 = scalar_select %p30, %s32, %s23
      %p34 = scmp.ge.s32.totalorder %s33, 2
      %s35 = scalar_select %p34, 0, %s33
      %s36 = ssub.s32 %s23, %s35
      %p37 = scmp.eq.s32.totalorder %s36, 0
      %s39 = sadd.s32 %s38, 1
      %s40 = scalar_select %p37, %s38, %s39
      %p43 = pneg %p37
      %p44 = scmp.eq.s32.totalorder %s16, 1
      %p45 = por %p43, %p44
      %p46 = scmp.ne.s32.totalorder %s38, %s41
      %p47 = scmp.eq.s32.totalorder %s16, 0
      %p48 = por %p46, %p47
      %p49 = scmp.ne.s32.totalorder %s38, %s41
      %p50 = scmp.eq.s32.totalorder %s21, 1
      %p51 = por %p49, %p50
      %p52 = scmp.ne.s32.totalorder %s41, %s42
      %p53 = scmp.eq.s32.totalorder %s21, 0
      %p54 = por %p52, %p53
      %p55 = scmp.ne.s32.totalorder %s41, %s42
      %p56 = scmp.eq.s32.totalorder %s22, 1
      %p57 = por %p55, %p56
      %p59 = scmp.ne.s32.totalorder %s42, %s58
      %p60 = scmp.eq.s32.totalorder %s22, 0
      %p61 = por %p59, %p60
      %s62 = ssub.s32 %s24, %s31
      %p63 = scmp.eq.s32.totalorder %s62, 0
      %s65 = sadd.s32 %s64, 1
      %s66 = scalar_select %p63, %s64, %s65
      %p69 = pneg %p63
      %p70 = scmp.eq.s32.totalorder %s16, 1
      %p71 = por %p69, %p70
      %p72 = scmp.ne.s32.totalorder %s64, %s67
      %p73 = scmp.eq.s32.totalorder %s16, 0
      %p74 = por %p72, %p73
      %p75 = scmp.ne.s32.totalorder %s64, %s67
      %p76 = scmp.eq.s32.totalorder %s21, 1
      %p77 = por %p75, %p76
      %p78 = scmp.ne.s32.totalorder %s67, %s68
      %p79 = scmp.eq.s32.totalorder %s21, 0
      %p80 = por %p78, %p79
      %p81 = scmp.ne.s32.totalorder %s67, %s68
      %p82 = scmp.eq.s32.totalorder %s22, 1
      %p83 = por %p81, %p82
      %p85 = scmp.ne.s32.totalorder %s68, %s84
      %p86 = scmp.eq.s32.totalorder %s22, 0
      %p87 = por %p85, %p86
      %s88 = ssub.s32 %s24, %s31
      %p89 = scmp.eq.s32.totalorder %s88, 0
      %s91 = sadd.s32 %s90, 1
      %s92 = scalar_select %p89, %s90, %s91
      %p95 = pneg %p89
      %p96 = scmp.eq.s32.totalorder %s16, 1
      %p97 = por %p95, %p96
      %p98 = scmp.ne.s32.totalorder %s90, %s93
      %p99 = scmp.eq.s32.totalorder %s16, 0
      %p100 = por %p98, %p99
      %p101 = scmp.ne.s32.totalorder %s90, %s93
      %p102 = scmp.eq.s32.totalorder %s21, 1
      %p103 = por %p101, %p102
      %p104 = scmp.ne.s32.totalorder %s93, %s94
      %p105 = scmp.eq.s32.totalorder %s21, 0
      %p106 = por %p104, %p105
      %p107 = scmp.ne.s32.totalorder %s93, %s94
      %p108 = scmp.eq.s32.totalorder %s22, 1
      %p109 = por %p107, %p108
      %p111 = scmp.ne.s32.totalorder %s94, %s110
      %p112 = scmp.eq.s32.totalorder %s22, 0
      %p113 = por %p111, %p112
      %s114 = ssub.s32 %s23, %s35
      %s115 = ssub.s32 %s24, %s31
      %s116 = sor.u32 %s114, %s115
      %p117 = scmp.eq.s32.totalorder %s116, 0
      %s119 = sadd.s32 %s118, 1
      %s120 = scalar_select %p117, %s118, %s119
      %p123 = pneg %p117
      %p124 = scmp.eq.s32.totalorder %s16, 1
      %p125 = por %p123, %p124
      %p126 = scmp.ne.s32.totalorder %s118, %s121
      %p127 = scmp.eq.s32.totalorder %s16, 0
      %p128 = por %p126, %p127
      %p129 = scmp.ne.s32.totalorder %s118, %s121
      %p130 = scmp.eq.s32.totalorder %s21, 1
      %p131 = por %p129, %p130
      %p132 = scmp.ne.s32.totalorder %s121, %s122
      %p133 = scmp.eq.s32.totalorder %s21, 0
      %p134 = por %p132, %p133
      %p135 = scmp.ne.s32.totalorder %s121, %s122
      %p136 = scmp.eq.s32.totalorder %s22, 1
      %p137 = por %p135, %p136
      %p139 = scmp.ne.s32.totalorder %s122, %s138
      %p140 = scmp.eq.s32.totalorder %s22, 0
      %p141 = por %p139, %p140
      %p142 = scmp.le.s32.totalorder 1, %s16
      %p143 = scmp.lt.s32.totalorder %s16, 3
      %p144 = pnand %p142, %p143
      %p145 = pneg %p144
      // Predicated region
      $region9: #{tpu_custom_call.1} parent=5 // pred_check
        _
      $region10: #{tpu_custom_call.1} parent=5 // pred_check_branch
        %147 = sbr.rel (%p144) target = $region12
      $region11: #{tpu_custom_call.1} parent=5 // pred_region
        %s148 = ssub.s32 %s16, 1
        // Predicated region
        $region13: #{tpu_custom_call.1} parent=11 // pred_check
          %p149 = pneg %p80
        $region14: #{tpu_custom_call.1} parent=11 // pred_check_branch
          %151 = sbr.rel (%p149) target = $region16
        $region15: #{tpu_custom_call.1} parent=11 // pred_region
          %s153 = ssub.s32 6144, 6144
          %154 = vsyncadd [#allocation6], %s153
          %s155 = smul.addr %s26, 64
          %s156 = scalar_lea.hbm %s1, %s155
          %s157 = sshll.u32 [#allocation5], 4
          %s158 = int_to_ptr.vmem [resolvable:$true] %s157
          %163 = dma.hbm_to_vmem [thread:$0]  %s156, 6144, %s158, [#allocation6], 64, 64, 4
        $region16: #{tpu_custom_call.1} parent=11 // pred_fallthru
          _
        // Predicated region
        $region17: #{tpu_custom_call.1} parent=11 // pred_check
          %p164 = pneg %p106
        $region18: #{tpu_custom_call.1} parent=11 // pred_check_branch
          %166 = sbr.rel (%p164) target = $region20
        $region19: #{tpu_custom_call.1} parent=11 // pred_region
          %p167 = scmp.lt.s32.totalorder %s26, 0
          %s168 = scalar_select %p167, %s26, 0
          %s169 = scalar_lea.vmem %s2, %s168
        $region20: #{tpu_custom_call.1} parent=11 // pred_fallthru
          _
      $region12: #{tpu_custom_call.1} parent=5 // pred_fallthru
        _
      %p170 = scmp.lt.s32.totalorder %s16, 2
      // Predicated region
      $region21: #{tpu_custom_call.1} parent=5 // pred_check
        %p171 = pneg %p170
      $region22: #{tpu_custom_call.1} parent=5 // pred_check_branch
        %173 = sbr.rel (%p171) target = $region24
      $region23: #{tpu_custom_call.1} parent=5 // pred_region
        // Predicated region
        $region25: #{tpu_custom_call.1} parent=23 // pred_check
          %p174 = pneg %p48
        $region26: #{tpu_custom_call.1} parent=23 // pred_check_branch
          %176 = sbr.rel (%p174) target = $region28
        $region27: #{tpu_custom_call.1} parent=23 // pred_region
          %s177 = sand.u32 %s38, 1
          %s178 = scalar_lea.sflag [#allocation3], %s177
          %s179 = sand.u32 %s38, 1
          %s180 = smul.addr %s179, 144
          %s181 = scalar_lea.vmem [#allocation2], %s180
          %s182 = smul.u32 6, %s23
          %s184 = ssub.s32 2304, 2304
          %185 = vsyncadd %s178, %s184
          %s186 = smul.addr %s182, 6
          %s187 = smul.addr %s186, 64
          %s188 = scalar_lea.hbm %s0, %s187
          %s189 = sshll.u32 %s181, 4
          %s190 = int_to_ptr.vmem [resolvable:$true] %s189
          %195 = dma.hbm_to_vmem [thread:$0]  %s188, 2304, %s190, %s178, 384, 384, 24
        $region28: #{tpu_custom_call.1} parent=23 // pred_fallthru
          _
      $region24: #{tpu_custom_call.1} parent=5 // pred_fallthru
        _
      %p196 = scmp.le.s32.totalorder 1, %s16
      %p197 = scmp.lt.s32.totalorder %s16, 3
      %p198 = pnand %p196, %p197
      %p199 = pneg %p198
      // Predicated region
      $region29: #{tpu_custom_call.1} parent=5 // pred_check
        _
      $region30: #{tpu_custom_call.1} parent=5 // pred_check_branch
        %201 = sbr.rel (%p198) target = $region32
      $region31: #{tpu_custom_call.1} parent=5 // pred_region
        %s202 = ssub.s32 %s16, 1
        %s203 = sand.u32 %s41, 1
        %s204 = scalar_lea.sflag [#allocation3], %s203
        %s205 = sand.u32 %s41, 1
        %s206 = smul.addr %s205, 144
        %s207 = scalar_lea.vmem [#allocation2], %s206
        // Predicated region
        $region33: #{tpu_custom_call.1} parent=31 // pred_check
          %p208 = pneg %p54
        $region34: #{tpu_custom_call.1} parent=31 // pred_check_branch
          %210 = sbr.rel (%p208) target = $region36
        $region35: #{tpu_custom_call.1} parent=31 // pred_region
          %211 = dma.done %s204, 2304
        $region36: #{tpu_custom_call.1} parent=31 // pred_fallthru
          _
        // Predicated region
        $region37: #{tpu_custom_call.1} parent=31 // pred_check
          %p212 = pneg %p80
        $region38: #{tpu_custom_call.1} parent=31 // pred_check_branch
          %214 = sbr.rel (%p212) target = $region40
        $region39: #{tpu_custom_call.1} parent=31 // pred_region
          %215 = dma.done [#allocation6], 6144
        $region40: #{tpu_custom_call.1} parent=31 // pred_fallthru
          _
        %s216 = sand.u32 %s41, 1
        %s217 = scalar_lea.sflag [#allocation3], %s216
        %s218 = sand.u32 %s41, 1
        %s219 = smul.addr %s218, 144
        %s220 = scalar_lea.vmem [#allocation2], %s219
        %p221 = pneg %p54
        %p222 = pneg %p51
        %p223 = pneg %p80
        %p224 = pneg %p77
        %p225 = scmp.lt.s32.totalorder %s26, 0
        %s226 = scalar_select %p225, %s26, 0
        %s227 = scalar_lea.vmem %s2, %s226
        %p228 = pneg %p106
        %p229 = pneg %p103
        %p230 = pneg %p134
        %p231 = pneg %p131
        %s232 = sand.u32 %s121, 1
        %s233 = scalar_lea.sflag [#allocation4], %s232
        %s234 = sand.u32 %s121, 1
        %s235 = smul.addr %s234, 48
        %s236 = scalar_lea.vmem [#allocation7], %s235
        %s237 = smul.u32 6, %s25
        %p238 = scmp.lt.s32.totalorder %s26, 0
        %s239 = scalar_select %p238, %s26, 0
        %s240 = scalar_lea.vmem %s2, %s239
        %s241 = smul.u32 6, %s25
        %v243 = vld [vmem:[%s207] sm:$0xff]
        %v244 = vld [vmem:[%s207 + $0x8] sm:$0xff]
        %v245 = vld [vmem:[%s207 + $0x10] sm:$0xff]
        %v246 = vld [vmem:[%s207 + $0x18] sm:$0xff]
        %v247 = vld [vmem:[%s207 + $0x20] sm:$0xff]
        %v248 = vld [vmem:[%s207 + $0x28] sm:$0xff]
        %v249 = vld [vmem:[%s207 + $0x30] sm:$0xff]
        %v250 = vld [vmem:[%s207 + $0x38] sm:$0xff]
        %v251 = vld [vmem:[%s207 + $0x40] sm:$0xff]
        %v252 = vld [vmem:[%s207 + $0x48] sm:$0xff]
        %v253 = vld [vmem:[%s207 + $0x50] sm:$0xff]
        %v254 = vld [vmem:[%s207 + $0x58] sm:$0xff]
        %v255 = vld [vmem:[%s207 + $0x60] sm:$0xff]
        %v256 = vld [vmem:[%s207 + $0x68] sm:$0xff]
        %v257 = vld [vmem:[%s207 + $0x70] sm:$0xff]
        %v258 = vld [vmem:[%s207 + $0x78] sm:$0xff]
        %v259 = vld [vmem:[%s207 + $0x80] sm:$0xff]
        %v260 = vld [vmem:[%s207 + $0x88] sm:$0xff]
        %v261 = vld [vmem:[#allocation5] sm:$0xf]
        %v262 = vld [vmem:[#allocation5 + $0x4] sm:$0xf]
        %v263 = vld [vmem:[#allocation5 + $0x8] sm:$0xf]
        %v264 = vld [vmem:[#allocation5 + $0xc] sm:$0xf]
        %v265 = vld [vmem:[#allocation5 + $0x10] sm:$0xf]
        %v266 = vld [vmem:[#allocation5 + $0x14] sm:$0xf]
        %v267 = vld [vmem:[#allocation5 + $0x18] sm:$0xf]
        %v268 = vld [vmem:[#allocation5 + $0x1c] sm:$0xf]
        %v269 = vld [vmem:[#allocation5 + $0x20] sm:$0xf]
        %v270 = vld [vmem:[#allocation5 + $0x24] sm:$0xf]
        %v271 = vld [vmem:[#allocation5 + $0x28] sm:$0xf]
        %v272 = vld [vmem:[#allocation5 + $0x2c] sm:$0xf]
        %v273 = vld [vmem:[#allocation5 + $0x30] sm:$0xf]
        %v274 = vld [vmem:[#allocation5 + $0x34] sm:$0xf]
        %v275 = vld [vmem:[#allocation5 + $0x38] sm:$0xf]
        %v276 = vld [vmem:[#allocation5 + $0x3c] sm:$0xf]
        %v277 = vld [vmem:[#allocation5 + $0x40] sm:$0xf]
        %v278 = vld [vmem:[#allocation5 + $0x44] sm:$0xf]
        %v279 = vld [vmem:[#allocation5 + $0x48] sm:$0xf]
        %v280 = vld [vmem:[#allocation5 + $0x4c] sm:$0xf]
        %v281 = vld [vmem:[#allocation5 + $0x50] sm:$0xf]
        %v282 = vld [vmem:[#allocation5 + $0x54] sm:$0xf]
        %v283 = vld [vmem:[#allocation5 + $0x58] sm:$0xf]
        %v284 = vld [vmem:[#allocation5 + $0x5c] sm:$0xf]
        %v285 = vld [vmem:[#allocation5 + $0x60] sm:$0xf]
        %v286 = vld [vmem:[#allocation5 + $0x64] sm:$0xf]
        %v287 = vld [vmem:[#allocation5 + $0x68] sm:$0xf]
        %v288 = vld [vmem:[#allocation5 + $0x6c] sm:$0xf]
        %v289 = vld [vmem:[#allocation5 + $0x70] sm:$0xf]
        %v290 = vld [vmem:[#allocation5 + $0x74] sm:$0xf]
        %v291 = vld [vmem:[#allocation5 + $0x78] sm:$0xf]
        %v292 = vld [vmem:[#allocation5 + $0x7c] sm:$0xf]
        %v293 = vld [vmem:[#allocation5 + $0x80] sm:$0xf]
        %v294 = vld [vmem:[#allocation5 + $0x84] sm:$0xf]
        %v295 = vld [vmem:[#allocation5 + $0x88] sm:$0xf]
        %v296 = vld [vmem:[#allocation5 + $0x8c] sm:$0xf]
        %v297 = vld [vmem:[#allocation5 + $0x90] sm:$0xf]
        %v298 = vld [vmem:[#allocation5 + $0x94] sm:$0xf]
        %v299 = vld [vmem:[#allocation5 + $0x98] sm:$0xf]
        %v300 = vld [vmem:[#allocation5 + $0x9c] sm:$0xf]
        %v301 = vld [vmem:[#allocation5 + $0xa0] sm:$0xf]
        %v302 = vld [vmem:[#allocation5 + $0xa4] sm:$0xf]
        %v303 = vld [vmem:[#allocation5 + $0xa8] sm:$0xf]
        %v304 = vld [vmem:[#allocation5 + $0xac] sm:$0xf]
        %v305 = vld [vmem:[#allocation5 + $0xb0] sm:$0xf]
        %v306 = vld [vmem:[#allocation5 + $0xb4] sm:$0xf]
        %v307 = vld [vmem:[#allocation5 + $0xb8] sm:$0xf]
        %v308 = vld [vmem:[#allocation5 + $0xbc] sm:$0xf]
        %v309 = vld [vmem:[#allocation5 + $0xc0] sm:$0xf]
        %v310 = vld [vmem:[#allocation5 + $0xc4] sm:$0xf]
        %v311 = vld [vmem:[#allocation5 + $0xc8] sm:$0xf]
        %v312 = vld [vmem:[#allocation5 + $0xcc] sm:$0xf]
        %v313 = vld [vmem:[#allocation5 + $0xd0] sm:$0xf]
        %v314 = vld [vmem:[#allocation5 + $0xd4] sm:$0xf]
        %v315 = vld [vmem:[#allocation5 + $0xd8] sm:$0xf]
        %v316 = vld [vmem:[#allocation5 + $0xdc] sm:$0xf]
        %v317 = vld [vmem:[#allocation5 + $0xe0] sm:$0xf]
        %v318 = vld [vmem:[#allocation5 + $0xe4] sm:$0xf]
        %v319 = vld [vmem:[#allocation5 + $0xe8] sm:$0xf]
        %v320 = vld [vmem:[#allocation5 + $0xec] sm:$0xf]
        %v321 = vld [vmem:[#allocation5 + $0xf0] sm:$0xf]
        %v322 = vld [vmem:[#allocation5 + $0xf4] sm:$0xf]
        %v323 = vld [vmem:[#allocation5 + $0xf8] sm:$0xf]
        %v324 = vld [vmem:[#allocation5 + $0xfc] sm:$0xf]
        %v325 = vld [vmem:[#allocation5 + $0x100] sm:$0xf]
        %v326 = vld [vmem:[#allocation5 + $0x104] sm:$0xf]
        %v327 = vld [vmem:[#allocation5 + $0x108] sm:$0xf]
        %v328 = vld [vmem:[#allocation5 + $0x10c] sm:$0xf]
        %v329 = vld [vmem:[#allocation5 + $0x110] sm:$0xf]
        %v330 = vld [vmem:[#allocation5 + $0x114] sm:$0xf]
        %v331 = vld [vmem:[#allocation5 + $0x118] sm:$0xf]
        %v332 = vld [vmem:[#allocation5 + $0x11c] sm:$0xf]
        %v333 = vld [vmem:[#allocation5 + $0x120] sm:$0xf]
        %v334 = vld [vmem:[#allocation5 + $0x124] sm:$0xf]
        %v335 = vld [vmem:[#allocation5 + $0x128] sm:$0xf]
        %v336 = vld [vmem:[#allocation5 + $0x12c] sm:$0xf]
        %v337 = vld [vmem:[#allocation5 + $0x130] sm:$0xf]
        %v338 = vld [vmem:[#allocation5 + $0x134] sm:$0xf]
        %v339 = vld [vmem:[#allocation5 + $0x138] sm:$0xf]
        %v340 = vld [vmem:[#allocation5 + $0x13c] sm:$0xf]
        %v341 = vld [vmem:[#allocation5 + $0x140] sm:$0xf]
        %v342 = vld [vmem:[#allocation5 + $0x144] sm:$0xf]
        %v343 = vld [vmem:[#allocation5 + $0x148] sm:$0xf]
        %v344 = vld [vmem:[#allocation5 + $0x14c] sm:$0xf]
        %v345 = vld [vmem:[#allocation5 + $0x150] sm:$0xf]
        %v346 = vld [vmem:[#allocation5 + $0x154] sm:$0xf]
        %v347 = vld [vmem:[#allocation5 + $0x158] sm:$0xf]
        %v348 = vld [vmem:[#allocation5 + $0x15c] sm:$0xf]
        %v349 = vld [vmem:[#allocation5 + $0x160] sm:$0xf]
        %v350 = vld [vmem:[#allocation5 + $0x164] sm:$0xf]
        %v351 = vld [vmem:[#allocation5 + $0x168] sm:$0xf]
        %v352 = vld [vmem:[#allocation5 + $0x16c] sm:$0xf]
        %v353 = vld [vmem:[#allocation5 + $0x170] sm:$0xf]
        %v354 = vld [vmem:[#allocation5 + $0x174] sm:$0xf]
        %v355 = vld [vmem:[#allocation5 + $0x178] sm:$0xf]
        %v356 = vld [vmem:[#allocation5 + $0x17c] sm:$0xf]
        %v357 = vld [vmem:[%s240] sm:$0x1]
        %v359 = vlaneseq
        %v360 = vshrl.u32 %v359, 7
        %v361 = vsub.s32 0, %v360
        %v362 = vrot.slane %v357, %v361
        %v382 = vunpack.c.l.b16 %v243
        %v383 = vunpack.c.h.b16 %v243
        %v384 = vunpack.c.l.b16 %v244
        %v385 = vunpack.c.h.b16 %v244
        %v386 = vunpack.c.l.b16 %v245
        %v387 = vunpack.c.h.b16 %v245
        %v388 = vunpack.c.l.b16 %v246
        %v389 = vunpack.c.h.b16 %v246
        %v390 = vunpack.c.l.b16 %v247
        %v391 = vunpack.c.h.b16 %v247
        %v392 = vunpack.c.l.b16 %v248
        %v393 = vunpack.c.h.b16 %v248
        %v394 = vunpack.c.l.b16 %v249
        %v395 = vunpack.c.h.b16 %v249
        %v396 = vunpack.c.l.b16 %v250
        %v397 = vunpack.c.h.b16 %v250
        %v398 = vunpack.c.l.b16 %v251
        %v399 = vunpack.c.h.b16 %v251
        %v400 = vunpack.c.l.b16 %v252
        %v401 = vunpack.c.h.b16 %v252
        %v402 = vunpack.c.l.b16 %v253
        %v403 = vunpack.c.h.b16 %v253
        %v404 = vunpack.c.l.b16 %v254
        %v405 = vunpack.c.h.b16 %v254
        %v406 = vunpack.c.l.b16 %v255
        %v407 = vunpack.c.h.b16 %v255
        %v408 = vunpack.c.l.b16 %v256
        %v409 = vunpack.c.h.b16 %v256
        %v410 = vunpack.c.l.b16 %v257
        %v411 = vunpack.c.h.b16 %v257
        %v412 = vunpack.c.l.b16 %v258
        %v413 = vunpack.c.h.b16 %v258
        %v414 = vunpack.c.l.b16 %v259
        %v415 = vunpack.c.h.b16 %v259
        %v416 = vunpack.c.l.b16 %v260
        %v417 = vunpack.c.h.b16 %v260
        %v418 = vpack.c.b16 %v388, %v382
        %v419 = vpack.c.b16 %v389, %v383
        %v420 = vpack.c.b16 %v390, %v384
        %v421 = vpack.c.b16 %v391, %v385
        %v422 = vpack.c.b16 %v392, %v386
        %v423 = vpack.c.b16 %v393, %v387
        %v424 = vpack.c.b16 %v400, %v394
        %v425 = vpack.c.b16 %v401, %v395
        %v426 = vpack.c.b16 %v402, %v396
        %v427 = vpack.c.b16 %v403, %v397
        %v428 = vpack.c.b16 %v404, %v398
        %v429 = vpack.c.b16 %v405, %v399
        %v430 = vpack.c.b16 %v412, %v406
        %v431 = vpack.c.b16 %v413, %v407
        %v432 = vpack.c.b16 %v414, %v408
        %v433 = vpack.c.b16 %v415, %v409
        %v434 = vpack.c.b16 %v416, %v410
        %v435 = vpack.c.b16 %v417, %v411
        %v550 = vunpack.c.l.b16 %v261
        %v551 = vunpack.c.l.b16 %v262
        %v552 = vunpack.c.l.b16 %v263
        %v553 = vunpack.c.l.b16 %v264
        %v554 = vunpack.c.l.b16 %v265
        %v555 = vunpack.c.l.b16 %v266
        %v556 = vunpack.c.l.b16 %v267
        %v557 = vunpack.c.l.b16 %v268
        %v558 = vunpack.c.l.b16 %v269
        %v559 = vunpack.c.l.b16 %v270
        %v560 = vunpack.c.l.b16 %v271
        %v561 = vunpack.c.l.b16 %v272
        %v562 = vunpack.c.l.b16 %v273
        %v563 = vunpack.c.l.b16 %v274
        %v564 = vunpack.c.l.b16 %v275
        %v565 = vunpack.c.l.b16 %v276
        %v566 = vunpack.c.l.b16 %v277
        %v567 = vunpack.c.l.b16 %v278
        %v568 = vunpack.c.l.b16 %v279
        %v569 = vunpack.c.l.b16 %v280
        %v570 = vunpack.c.l.b16 %v281
        %v571 = vunpack.c.l.b16 %v282
        %v572 = vunpack.c.l.b16 %v283
        %v573 = vunpack.c.l.b16 %v284
        %v574 = vunpack.c.l.b16 %v285
        %v575 = vunpack.c.l.b16 %v286
        %v576 = vunpack.c.l.b16 %v287
        %v577 = vunpack.c.l.b16 %v288
        %v578 = vunpack.c.l.b16 %v289
        %v579 = vunpack.c.l.b16 %v290
        %v580 = vunpack.c.l.b16 %v291
        %v581 = vunpack.c.l.b16 %v292
        %v582 = vunpack.c.l.b16 %v293
        %v583 = vunpack.c.l.b16 %v294
        %v584 = vunpack.c.l.b16 %v295
        %v585 = vunpack.c.l.b16 %v296
        %v586 = vunpack.c.l.b16 %v297
        %v587 = vunpack.c.l.b16 %v298
        %v588 = vunpack.c.l.b16 %v299
        %v589 = vunpack.c.l.b16 %v300
        %v590 = vunpack.c.l.b16 %v301
        %v591 = vunpack.c.l.b16 %v302
        %v592 = vunpack.c.l.b16 %v303
        %v593 = vunpack.c.l.b16 %v304
        %v594 = vunpack.c.l.b16 %v305
        %v595 = vunpack.c.l.b16 %v306
        %v596 = vunpack.c.l.b16 %v307
        %v597 = vunpack.c.l.b16 %v308
        %v598 = vunpack.c.l.b16 %v309
        %v599 = vunpack.c.l.b16 %v310
        %v600 = vunpack.c.l.b16 %v311
        %v601 = vunpack.c.l.b16 %v312
        %v602 = vunpack.c.l.b16 %v313
        %v603 = vunpack.c.l.b16 %v314
        %v604 = vunpack.c.l.b16 %v315
        %v605 = vunpack.c.l.b16 %v316
        %v606 = vunpack.c.l.b16 %v317
        %v607 = vunpack.c.l.b16 %v318
        %v608 = vunpack.c.l.b16 %v319
        %v609 = vunpack.c.l.b16 %v320
        %v610 = vunpack.c.l.b16 %v321
        %v611 = vunpack.c.l.b16 %v322
        %v612 = vunpack.c.l.b16 %v323
        %v613 = vunpack.c.l.b16 %v324
        %v614 = vunpack.c.l.b16 %v325
        %v615 = vunpack.c.l.b16 %v326
        %v616 = vunpack.c.l.b16 %v327
        %v617 = vunpack.c.l.b16 %v328
        %v618 = vunpack.c.l.b16 %v329
        %v619 = vunpack.c.l.b16 %v330
        %v620 = vunpack.c.l.b16 %v331
        %v621 = vunpack.c.l.b16 %v332
        %v622 = vunpack.c.l.b16 %v333
        %v623 = vunpack.c.l.b16 %v334
        %v624 = vunpack.c.l.b16 %v335
        %v625 = vunpack.c.l.b16 %v336
        %v626 = vunpack.c.l.b16 %v337
        %v627 = vunpack.c.l.b16 %v338
        %v628 = vunpack.c.l.b16 %v339
        %v629 = vunpack.c.l.b16 %v340
        %v630 = vunpack.c.l.b16 %v341
        %v631 = vunpack.c.l.b16 %v342
        %v632 = vunpack.c.l.b16 %v343
        %v633 = vunpack.c.l.b16 %v344
        %v634 = vunpack.c.l.b16 %v345
        %v635 = vunpack.c.l.b16 %v346
        %v636 = vunpack.c.l.b16 %v347
        %v637 = vunpack.c.l.b16 %v348
        %v638 = vunpack.c.l.b16 %v349
        %v639 = vunpack.c.l.b16 %v350
        %v640 = vunpack.c.l.b16 %v351
        %v641 = vunpack.c.l.b16 %v352
        %v642 = vunpack.c.l.b16 %v353
        %v643 = vunpack.c.l.b16 %v354
        %v644 = vunpack.c.l.b16 %v355
        %v645 = vunpack.c.l.b16 %v356
        %v646 = vpack.c.b16 %v551, %v550
        %v647 = vpack.c.b16 %v553, %v552
        %v648 = vpack.c.b16 %v555, %v554
        %v649 = vpack.c.b16 %v557, %v556
        %v650 = vpack.c.b16 %v559, %v558
        %v651 = vpack.c.b16 %v561, %v560
        %v652 = vpack.c.b16 %v563, %v562
        %v653 = vpack.c.b16 %v565, %v564
        %v654 = vpack.c.b16 %v567, %v566
        %v655 = vpack.c.b16 %v569, %v568
        %v656 = vpack.c.b16 %v571, %v570
        %v657 = vpack.c.b16 %v573, %v572
        %v658 = vpack.c.b16 %v575, %v574
        %v659 = vpack.c.b16 %v577, %v576
        %v660 = vpack.c.b16 %v579, %v578
        %v661 = vpack.c.b16 %v581, %v580
        %v662 = vpack.c.b16 %v583, %v582
        %v663 = vpack.c.b16 %v585, %v584
        %v664 = vpack.c.b16 %v587, %v586
        %v665 = vpack.c.b16 %v589, %v588
        %v666 = vpack.c.b16 %v591, %v590
        %v667 = vpack.c.b16 %v593, %v592
        %v668 = vpack.c.b16 %v595, %v594
        %v669 = vpack.c.b16 %v597, %v596
        %v670 = vpack.c.b16 %v599, %v598
        %v671 = vpack.c.b16 %v601, %v600
        %v672 = vpack.c.b16 %v603, %v602
        %v673 = vpack.c.b16 %v605, %v604
        %v674 = vpack.c.b16 %v607, %v606
        %v675 = vpack.c.b16 %v609, %v608
        %v676 = vpack.c.b16 %v611, %v610
        %v677 = vpack.c.b16 %v613, %v612
        %v678 = vpack.c.b16 %v615, %v614
        %v679 = vpack.c.b16 %v617, %v616
        %v680 = vpack.c.b16 %v619, %v618
        %v681 = vpack.c.b16 %v621, %v620
        %v682 = vpack.c.b16 %v623, %v622
        %v683 = vpack.c.b16 %v625, %v624
        %v684 = vpack.c.b16 %v627, %v626
        %v685 = vpack.c.b16 %v629, %v628
        %v686 = vpack.c.b16 %v631, %v630
        %v687 = vpack.c.b16 %v633, %v632
        %v688 = vpack.c.b16 %v635, %v634
        %v689 = vpack.c.b16 %v637, %v636
        %v690 = vpack.c.b16 %v639, %v638
        %v691 = vpack.c.b16 %v641, %v640
        %v692 = vpack.c.b16 %v643, %v642
        %v693 = vpack.c.b16 %v645, %v644
        %742 = vmatprep.subr.bf16.mxu0 0
        %743 = vmatpush1.bf16.msra.mxu0 %v653
        %744 = vmatprep.subr.bf16.mxu0 0
        %745 = vmatpush1.bf16.msra.mxu0 %v652
        %746 = vmatprep.subr.bf16.mxu0 0
        %747 = vmatpush1.bf16.msra.mxu0 %v651
        %748 = vmatprep.subr.bf16.mxu0 0
        %749 = vmatpush1.bf16.msra.mxu0 %v650
        %750 = vmatprep.subr.bf16.mxu0 0
        %751 = vmatpush1.bf16.msra.mxu0 %v649
        %752 = vmatprep.subr.bf16.mxu0 0
        %753 = vmatpush1.bf16.msra.mxu0 %v648
        %754 = vmatprep.subr.bf16.mxu0 0
        %755 = vmatpush1.bf16.msra.mxu0 %v647
        %756 = vmatprep.subr.bf16.mxu0 0
        %757 = vmatpush1.bf16.msra.mxu0 %v646
        %758 = vmatprep.subr.bf16.mxu0 0
        %759 = vmatpush2.bf16.msra.mxu0 %v661
        %760 = vmatprep.subr.bf16.mxu0 0
        %761 = vmatpush2.bf16.msra.mxu0 %v660
        %762 = vmatprep.subr.bf16.mxu0 0
        %763 = vmatpush2.bf16.msra.mxu0 %v659
        %764 = vmatprep.subr.bf16.mxu0 0
        %765 = vmatpush2.bf16.msra.mxu0 %v658
        %766 = vmatprep.subr.bf16.mxu0 0
        %767 = vmatpush2.bf16.msra.mxu0 %v657
        %768 = vmatprep.subr.bf16.mxu0 0
        %769 = vmatpush2.bf16.msra.mxu0 %v656
        %770 = vmatprep.subr.bf16.mxu0 0
        %771 = vmatpush2.bf16.msra.mxu0 %v655
        %772 = vmatprep.subr.bf16.mxu0 0
        %773 = vmatpush2.bf16.msra.mxu0 %v654
        %774 = vmatprep.mubr.bf16.mxu0 %v419
        %775 = vmatmul.mubr.bf16.gmra.mxu0 %v418
        %v776 = vpop.f32.mrf.mxu0
        %v777 = vadd.f32 %v362, %v776
        %v778 = vpop.f32.mrf.mxu0
        %v779 = vpop.f32.mrf.mxu0
        %v780 = vadd.f32 %v362, %v779
        %v781 = vpop.f32.mrf.mxu0
        %782 = vmatprep.mubr.bf16.mxu0 %v425
        %783 = vmatmul.mubr.bf16.gmra.mxu0 %v424
        %v784 = vpop.f32.mrf.mxu0
        %v785 = vadd.f32 %v362, %v784
        %v786 = vpop.f32.mrf.mxu0
        %v787 = vpop.f32.mrf.mxu0
        %v788 = vadd.f32 %v362, %v787
        %v789 = vpop.f32.mrf.mxu0
        %790 = vmatprep.mubr.bf16.mxu0 %v431
        %791 = vmatmul.mubr.bf16.gmra.mxu0 %v430
        %v792 = vpop.f32.mrf.mxu0
        %v793 = vadd.f32 %v362, %v792
        %v794 = vpop.f32.mrf.mxu0
        %v795 = vpop.f32.mrf.mxu0
        %v796 = vadd.f32 %v362, %v795
        %v797 = vpop.f32.mrf.mxu0
        %798 = vdwg.mxu0
        %799 = vmatprep.subr.bf16.mxu0 0
        %800 = vmatpush1.bf16.msra.mxu0 %v669
        %801 = vmatprep.subr.bf16.mxu0 0
        %802 = vmatpush1.bf16.msra.mxu0 %v668
        %803 = vmatprep.subr.bf16.mxu0 0
        %804 = vmatpush1.bf16.msra.mxu0 %v667
        %805 = vmatprep.subr.bf16.mxu0 0
        %806 = vmatpush1.bf16.msra.mxu0 %v666
        %807 = vmatprep.subr.bf16.mxu0 0
        %808 = vmatpush1.bf16.msra.mxu0 %v665
        %809 = vmatprep.subr.bf16.mxu0 0
        %810 = vmatpush1.bf16.msra.mxu0 %v664
        %811 = vmatprep.subr.bf16.mxu0 0
        %812 = vmatpush1.bf16.msra.mxu0 %v663
        %813 = vmatprep.subr.bf16.mxu0 0
        %814 = vmatpush1.bf16.msra.mxu0 %v662
        %815 = vmatprep.subr.bf16.mxu0 0
        %816 = vmatpush2.bf16.msra.mxu0 %v677
        %817 = vmatprep.subr.bf16.mxu0 0
        %818 = vmatpush2.bf16.msra.mxu0 %v676
        %819 = vmatprep.subr.bf16.mxu0 0
        %820 = vmatpush2.bf16.msra.mxu0 %v675
        %821 = vmatprep.subr.bf16.mxu0 0
        %822 = vmatpush2.bf16.msra.mxu0 %v674
        %823 = vmatprep.subr.bf16.mxu0 0
        %824 = vmatpush2.bf16.msra.mxu0 %v673
        %825 = vmatprep.subr.bf16.mxu0 0
        %826 = vmatpush2.bf16.msra.mxu0 %v672
        %827 = vmatprep.subr.bf16.mxu0 0
        %828 = vmatpush2.bf16.msra.mxu0 %v671
        %829 = vmatprep.subr.bf16.mxu0 0
        %830 = vmatpush2.bf16.msra.mxu0 %v670
        %831 = vmatprep.mubr.bf16.mxu0 %v421
        %832 = vmatmul.mubr.bf16.gmra.mxu0 %v420
        %v833 = vpop.f32.mrf.mxu0
        %v834 = vadd.f32 %v777, %v833
        %v835 = vpop.f32.mrf.mxu0
        %v836 = vpop.f32.mrf.mxu0
        %v837 = vadd.f32 %v780, %v836
        %v838 = vpop.f32.mrf.mxu0
        %839 = vmatprep.mubr.bf16.mxu0 %v427
        %840 = vmatmul.mubr.bf16.gmra.mxu0 %v426
        %v841 = vpop.f32.mrf.mxu0
        %v842 = vadd.f32 %v785, %v841
        %v843 = vpop.f32.mrf.mxu0
        %v844 = vpop.f32.mrf.mxu0
        %v845 = vadd.f32 %v788, %v844
        %v846 = vpop.f32.mrf.mxu0
        %847 = vmatprep.mubr.bf16.mxu0 %v433
        %848 = vmatmul.mubr.bf16.gmra.mxu0 %v432
        %v849 = vpop.f32.mrf.mxu0
        %v850 = vadd.f32 %v793, %v849
        %v851 = vpop.f32.mrf.mxu0
        %v852 = vpop.f32.mrf.mxu0
        %v853 = vadd.f32 %v796, %v852
        %v854 = vpop.f32.mrf.mxu0
        %855 = vdwg.mxu0
        %856 = vmatprep.subr.bf16.mxu0 0
        %857 = vmatpush1.bf16.msra.mxu0 %v685
        %858 = vmatprep.subr.bf16.mxu0 0
        %859 = vmatpush1.bf16.msra.mxu0 %v684
        %860 = vmatprep.subr.bf16.mxu0 0
        %861 = vmatpush1.bf16.msra.mxu0 %v683
        %862 = vmatprep.subr.bf16.mxu0 0
        %863 = vmatpush1.bf16.msra.mxu0 %v682
        %864 = vmatprep.subr.bf16.mxu0 0
        %865 = vmatpush1.bf16.msra.mxu0 %v681
        %866 = vmatprep.subr.bf16.mxu0 0
        %867 = vmatpush1.bf16.msra.mxu0 %v680
        %868 = vmatprep.subr.bf16.mxu0 0
        %869 = vmatpush1.bf16.msra.mxu0 %v679
        %870 = vmatprep.subr.bf16.mxu0 0
        %871 = vmatpush1.bf16.msra.mxu0 %v678
        %872 = vmatprep.subr.bf16.mxu0 0
        %873 = vmatpush2.bf16.msra.mxu0 %v693
        %874 = vmatprep.subr.bf16.mxu0 0
        %875 = vmatpush2.bf16.msra.mxu0 %v692
        %876 = vmatprep.subr.bf16.mxu0 0
        %877 = vmatpush2.bf16.msra.mxu0 %v691
        %878 = vmatprep.subr.bf16.mxu0 0
        %879 = vmatpush2.bf16.msra.mxu0 %v690
        %880 = vmatprep.subr.bf16.mxu0 0
        %881 = vmatpush2.bf16.msra.mxu0 %v689
        %882 = vmatprep.subr.bf16.mxu0 0
        %883 = vmatpush2.bf16.msra.mxu0 %v688
        %884 = vmatprep.subr.bf16.mxu0 0
        %885 = vmatpush2.bf16.msra.mxu0 %v687
        %886 = vmatprep.subr.bf16.mxu0 0
        %887 = vmatpush2.bf16.msra.mxu0 %v686
        %888 = vmatprep.mubr.bf16.mxu0 %v423
        %889 = vmatmul.mubr.bf16.gmra.mxu0 %v422
        %v890 = vpop.f32.mrf.mxu0
        %v891 = vadd.f32 %v834, %v890
        %v892 = vpop.f32.mrf.mxu0
        %v893 = vpop.f32.mrf.mxu0
        %v894 = vadd.f32 %v837, %v893
        %v895 = vpop.f32.mrf.mxu0
        %896 = vmatprep.mubr.bf16.mxu0 %v429
        %897 = vmatmul.mubr.bf16.gmra.mxu0 %v428
        %v898 = vpop.f32.mrf.mxu0
        %v899 = vadd.f32 %v842, %v898
        %v900 = vpop.f32.mrf.mxu0
        %v901 = vpop.f32.mrf.mxu0
        %v902 = vadd.f32 %v845, %v901
        %v903 = vpop.f32.mrf.mxu0
        %904 = vmatprep.mubr.bf16.mxu0 %v435
        %905 = vmatmul.mubr.bf16.gmra.mxu0 %v434
        %v906 = vpop.f32.mrf.mxu0
        %v907 = vadd.f32 %v850, %v906
        %v908 = vpop.f32.mrf.mxu0
        %v909 = vpop.f32.mrf.mxu0
        %v910 = vadd.f32 %v853, %v909
        %v911 = vpop.f32.mrf.mxu0
        %912 = vdwg.mxu0
        %913 = vst [vmem:[%s236] sm:$0xff] %v891
        %914 = vst [vmem:[%s236 + $0x8] sm:$0xff] %v894
        %915 = vst [vmem:[%s236 + $0x10] sm:$0xff] %v899
        %916 = vst [vmem:[%s236 + $0x18] sm:$0xff] %v902
        %917 = vst [vmem:[%s236 + $0x20] sm:$0xff] %v907
        %918 = vst [vmem:[%s236 + $0x28] sm:$0xff] %v910
        %s919 = sand.u32 %s121, 1
        %s920 = scalar_lea.sflag [#allocation4], %s919
        %s921 = sand.u32 %s121, 1
        %s922 = smul.addr %s921, 48
        %s923 = scalar_lea.vmem [#allocation7], %s922
        // Predicated region
        $region41: #{tpu_custom_call.1} parent=31 // pred_check
          %p924 = pneg %p131
        $region42: #{tpu_custom_call.1} parent=31 // pred_check_branch
          %926 = sbr.rel (%p924) target = $region44
        $region43: #{tpu_custom_call.1} parent=31 // pred_region
          %s927 = smul.u32 6, %s25
          %s929 = ssub.s32 768, 768
          %930 = vsyncadd %s920, %s929
          %s931 = sadd.s32 %s26, %s927
          %s932 = smul.addr %s931, 128
          %s933 = scalar_lea.hbm %s3, %s932
          %s934 = sshll.u32 %s923, 4
          %s935 = int_to_ptr.vmem [resolvable:$true] %s934
          %940 = dma.vmem_to_hbm [thread:$0]  %s935, 768, %s933, %s920, 128, 128, 8
        $region44: #{tpu_custom_call.1} parent=31 // pred_fallthru
          _
      $region32: #{tpu_custom_call.1} parent=5 // pred_fallthru
        _
      %p941 = scmp.le.s32.totalorder 2, %s16
      // Predicated region
      $region45: #{tpu_custom_call.1} parent=5 // pred_check
        %p942 = pneg %p941
      $region46: #{tpu_custom_call.1} parent=5 // pred_check_branch
        %944 = sbr.rel (%p942) target = $region48
      $region47: #{tpu_custom_call.1} parent=5 // pred_region
        %s945 = ssub.s32 %s16, 2
        // Predicated region
        $region49: #{tpu_custom_call.1} parent=47 // pred_check
          %p946 = pneg %p137
        $region50: #{tpu_custom_call.1} parent=47 // pred_check_branch
          %948 = sbr.rel (%p946) target = $region52
        $region51: #{tpu_custom_call.1} parent=47 // pred_region
          %s949 = sand.u32 %s122, 1
          %s950 = scalar_lea.sflag [#allocation4], %s949
          %s951 = sand.u32 %s122, 1
          %s952 = smul.addr %s951, 48
          %s953 = scalar_lea.vmem [#allocation7], %s952
          %954 = dma.done %s950, 768
        $region52: #{tpu_custom_call.1} parent=47 // pred_fallthru
          _
      $region48: #{tpu_custom_call.1} parent=5 // pred_fallthru
        _
    $region6: #{tpu_custom_call.1} parent=1 // loop_footer
      %s20 = sadd.s32 1, %s16
    $region7: #{tpu_custom_call.1} parent=1 // loop_footer_branch
      %15 = sbr.rel target = $region3
    $region8: #{tpu_custom_call.1} parent=1 // loop_exit
      _
    %955 = vsyncpa [#allocation3], 1
    %s956 = scalar_lea.sflag [#allocation3], 1
    %957 = vsyncpa %s956, 1
    %958 = vsyncpa [#allocation6], 1
    %959 = vsyncpa [#allocation4], 1
    %s960 = scalar_lea.sflag [#allocation4], 1
    %961 = vsyncpa %s960, 1

</llo_original>
